<compile_context>
chip_gen: v7x
topology: tpu7x:2x2x1
jax: 0.10.0
libtpu: 0.0.40
codegen_flags: <defaults>
</compile_context>

<pallas_src>
import jax
import jax.numpy as jnp
from jax.experimental import pallas as pl
from jax.experimental.pallas import tpu as pltpu

_LANE = 128
_MIN_PIPELINE_STEPS = 4          # want >=4 grid steps so DMA in/out overlap
_MIN_BLOCK_BYTES = 1 << 20       # never shrink blocks below ~1 MiB for overlap


# --------------------------------------------------------------------------- #
# Kernels
# --------------------------------------------------------------------------- #
def _sd_row3d_kernel(scale_smem, x_ref, o_ref):
    # scale_smem: (N,) float32 in SMEM, one keep/scale factor per batch row.
    # x_ref / o_ref: (1, S, 128) feature tile of the current batch row.
    s = scale_smem[pl.program_id(0)]                 # scalar splat multiply
    o_ref[...] = (x_ref[...] * s).astype(o_ref.dtype)


def _sd_row3d_fused_kernel(scale_smem, x_ref, r_ref, o_ref):
    # Fused residual add: out = x * scale + shortcut.
    s = scale_smem[pl.program_id(0)]
    o_ref[...] = (x_ref[...] * s + r_ref[...]).astype(o_ref.dtype)


def _sd_row2d_kernel(scale_ref, x_ref, o_ref):
    # scale_ref: (TN, 1) per-row scale in x.dtype, broadcast along lanes.
    o_ref[...] = x_ref[...] * scale_ref[...]


def _sd_row2d_fused_kernel(scale_ref, x_ref, r_ref, o_ref):
    o_ref[...] = x_ref[...] * scale_ref[...] + r_ref[...]


# --------------------------------------------------------------------------- #
# Tiling / VMEM budget helpers
# --------------------------------------------------------------------------- #
def _vmem_budget(num_streams):
    """Returns (vmem_limit_bytes, target_block_bytes) for this chip."""
    try:
        cap = int(getattr(pltpu.get_tpu_info(), "vmem_capacity_bytes", 64 << 20))
    except Exception:
        cap = 64 << 20                       # conservative: v7x per-TC VMEM
    vmem_limit = min((cap * 3) // 4, 96 << 20)   # ~96 MiB v5e/v6e, ~48 MiB v7x
    # num_streams big tensors, each double-buffered, plus 2x slack for Mosaic
    # internal scratch -> per-block target (capped at 8 MiB).
    target = min(8 << 20, vmem_limit // (4 * num_streams))
    target = max(target, 1 << 20)
    return vmem_limit, target


def _pick_rows_tile(n, rows, itemsize, target_bytes):
    """S for blocks (1, S, 128) over a per-row (rows, 128) feature layout."""
    row_bytes = _LANE * itemsize
    if rows <= 8:
        return rows
    s = (target_bytes // row_bytes) // 8 * 8
    s = min(max(8, s), rows)
    steps = n * pl.cdiv(rows, s)
    if steps < _MIN_PIPELINE_STEPS and s > 8:
        need = pl.cdiv(_MIN_PIPELINE_STEPS, n)
        cand = max(8, (rows // max(1, need)) // 8 * 8)
        if cand < s and cand * row_bytes >= _MIN_BLOCK_BYTES:
            s = cand
    return s


def _pick_2d_tiles(n, total, itemsize, target_bytes, sub):
    """(TN, TF) for blocks over the (N, total) flattened layout."""
    # Batch (sublane) tile: keep all rows per block unless that alone blows
    # the budget at the minimum lane width.
    if n <= sub or n * _LANE * itemsize <= target_bytes:
        tn = n
    else:
        tn = max(sub, (target_bytes // (_LANE * itemsize)) // sub * sub)
        tn = min(tn, n)
    # Feature (lane) tile: as wide as the budget allows, multiple of 128.
    if total <= _LANE:
        return tn, total
    tf = (target_bytes // max(1, tn * itemsize)) // _LANE * _LANE
    tf = max(_LANE, min(tf, total))
    steps = pl.cdiv(n, tn) * pl.cdiv(total, tf)
    if steps < _MIN_PIPELINE_STEPS and tf > _LANE:
        need = pl.cdiv(_MIN_PIPELINE_STEPS, pl.cdiv(n, tn))
        cand = max(_LANE, (total // max(1, need)) // _LANE * _LANE)
        if cand < tf and cand * tn * itemsize >= _MIN_BLOCK_BYTES:
            tf = cand
    return tn, tf


# --------------------------------------------------------------------------- #
# pallas_call wrappers
# --------------------------------------------------------------------------- #
def _row_scale_3d(x3, scale_f32, shortcut3, *, s_tile, compiler_params):
    n, rows, lane = x3.shape
    grid = (n, pl.cdiv(rows, s_tile))
    tile_spec = pl.BlockSpec((1, s_tile, lane), lambda i, j: (i, j, 0))
    in_specs = [pl.BlockSpec(memory_space=pltpu.SMEM), tile_spec]
    operands = [scale_f32, x3]
    kernel = _sd_row3d_kernel
    if shortcut3 is not None:
        in_specs.append(tile_spec)
        operands.append(shortcut3)
        kernel = _sd_row3d_fused_kernel
    return pl.pallas_call(
        kernel,
        out_shape=jax.ShapeDtypeStruct(x3.shape, x3.dtype),
        grid=grid,
        in_specs=in_specs,
        out_specs=tile_spec,
        compiler_params=compiler_params,
    )(*operands)


def _row_scale_2d(x2, scale2, shortcut2, *, tn, tf, compiler_params):
    n, total = x2.shape
    grid = (pl.cdiv(n, tn), pl.cdiv(total, tf))
    tile_spec = pl.BlockSpec((tn, tf), lambda i, j: (i, j))
    scale_spec = pl.BlockSpec((tn, 1), lambda i, j: (i, 0))
    in_specs = [scale_spec, tile_spec]
    operands = [scale2, x2]
    kernel = _sd_row2d_kernel
    if shortcut2 is not None:
        in_specs.append(tile_spec)
        operands.append(shortcut2)
        kernel = _sd_row2d_fused_kernel
    return pl.pallas_call(
        kernel,
        out_shape=jax.ShapeDtypeStruct(x2.shape, x2.dtype),
        grid=grid,
        in_specs=in_specs,
        out_specs=tile_spec,
        compiler_params=compiler_params,
    )(*operands)


# --------------------------------------------------------------------------- #
# Public wrapper (mirrors torchvision stochastic_depth forward semantics)
# --------------------------------------------------------------------------- #
def stochastic_depth_pallas(x, p: float, mode: str, training: bool = True,
                            key=None, shortcut=None):
    """JAX/Pallas equivalent of torchvision-style stochastic_depth (forward).

    If `shortcut` is given, returns stochastic_depth(x) + shortcut fused in a
    single HBM pass (the EfficientNetV2 block pattern); otherwise identical to
    the standalone module.
    """
    if p < 0.0 or p > 1.0:
        raise ValueError(f"drop probability has to be between 0 and 1, but got {p}")
    if mode not in ("batch", "row"):
        raise ValueError(f"mode has to be either 'batch' or 'row', but got {mode}")
    if shortcut is not None:
        if shortcut.shape != x.shape:
            raise ValueError("shortcut must have the same shape as the input")
        shortcut = shortcut.astype(x.dtype)

    if not training or p == 0.0:
        return x if shortcut is None else x + shortcut

    survival_rate = 1.0 - p
    inv_sr = (1.0 / survival_rate) if survival_rate > 0.0 else 1.0
    if key is None:
        # NOTE: deterministic default — pass a fresh key per call in training.
        key = jax.random.PRNGKey(0)

    if mode == "batch":
        # Single keep bit; the drop path never reads x, so skip the kernel.
        keep = jax.random.bernoulli(key, survival_rate, ())
        if shortcut is None:
            return jax.lax.cond(
                keep,
                lambda xx: xx * jnp.asarray(inv_sr, dtype=xx.dtype),
                lambda xx: jnp.zeros_like(xx),
                x)
        return jax.lax.cond(
            keep,
            lambda ops: ops[0] * jnp.asarray(inv_sr, dtype=ops[0].dtype) + ops[1],
            lambda ops: ops[1],
            (x, shortcut))

    # mode == "row": independent keep decision per batch row.
    orig_shape = x.shape
    n = orig_shape[0]
    total = 1
    for d in orig_shape[1:]:
        total *= d
    if n == 0 or total == 0:
        return x if shortcut is None else x + shortcut

    keep = jax.random.bernoulli(key, survival_rate, (n,))
    scale_f32 = jnp.where(keep, jnp.float32(inv_sr), jnp.float32(0.0))

    itemsize = jnp.dtype(x.dtype).itemsize
    sub = max(8, (8 * 4) // max(1, itemsize))   # sublane pack: 8 f32, 16 bf16
    num_streams = 2 if shortcut is None else 3
    vmem_limit, target_bytes = _vmem_budget(num_streams)
    compiler_params = pltpu.CompilerParams(
        dimension_semantics=("parallel", "parallel"),
        vmem_limit_bytes=int(vmem_limit))

    if n < sub and total % _LANE == 0:
        # Small / sublane-unaligned batch: sublane- and lane-dense per-row
        # layout, per-row scale as an SMEM scalar.
        rows = total // _LANE
        x3 = x.reshape(n, rows, _LANE)
        r3 = None if shortcut is None else shortcut.reshape(n, rows, _LANE)
        s_tile = _pick_rows_tile(n, rows, itemsize, target_bytes)
        out3 = _row_scale_3d(x3, scale_f32, r3,
                             s_tile=s_tile, compiler_params=compiler_params)
        return out3.reshape(orig_shape)

    # General path: lane-dense (N, total) layout, per-row scale as a VMEM
    # column in x.dtype broadcast along lanes.
    x2 = x.reshape(n, total)
    r2 = None if shortcut is None else shortcut.reshape(n, total)
    scale2 = scale_f32.astype(x.dtype).reshape(n, 1)
    tn, tf = _pick_2d_tiles(n, total, itemsize, target_bytes, sub)
    out2 = _row_scale_2d(x2, scale2, r2,
                         tn=tn, tf=tf, compiler_params=compiler_params)
    return out2.reshape(orig_shape)


class StochasticDepth:
    """Minimal JAX/Pallas mirror of the PyTorch StochasticDepth module."""

    def __init__(self, p: float, mode: str):
        self.p = p
        self.mode = mode
        self.training = True

    def __call__(self, x, key=None, shortcut=None):
        return stochastic_depth_pallas(x, self.p, self.mode, self.training,
                                       key=key, shortcut=shortcut)

    def __repr__(self):
        return f"StochasticDepth(p={self.p}, mode={self.mode})"


if __name__ == "__main__":
    root = jax.random.PRNGKey(0)
    kx, kdrop, kbatch, kres, kx2, kdrop2 = jax.random.split(root, 6)

    # --- per-row stochastic depth on NCHW activations (3-D dense-layout path) ---
    x = jax.random.normal(kx, (2, 4, 16, 16), dtype=jnp.float32)
    module = StochasticDepth(p=0.5, mode="row")
    y = jax.block_until_ready(module(x, key=kdrop))

    sr = 1.0 - module.p
    for b in range(x.shape[0]):
        row = y[b]
        is_zero = bool(jnp.all(row == 0.0))
        is_scaled = bool(jnp.allclose(row, x[b] / sr, rtol=1e-6, atol=1e-6))
        assert is_zero or is_scaled, "row is neither dropped nor correctly scaled"

    # --- fused residual add (EfficientNetV2 block: sd(block(x)) + x) ---
    res = jax.random.normal(kres, x.shape, dtype=jnp.float32)
    y_fused = jax.block_until_ready(module(x, key=kdrop, shortcut=res))
    assert bool(jnp.allclose(y_fused, y + res, rtol=1e-6, atol=1e-6)), \
        "fused shortcut output does not match sd(x) + shortcut"

    # --- 2-D fallback path (batch >= sublane pack / ragged feature count) ---
    x2 = jax.random.normal(kx2, (8, 3, 5, 7), dtype=jnp.float32)
    module2 = StochasticDepth(p=0.4, mode="row")
    y2 = jax.block_until_ready(module2(x2, key=kdrop2))
    sr2 = 1.0 - module2.p
    for b in range(x2.shape[0]):
        row = y2[b]
        ok = bool(jnp.all(row == 0.0)) or bool(
            jnp.allclose(row, x2[b] / sr2, rtol=1e-6, atol=1e-6))
        assert ok, "2-D path row is neither dropped nor correctly scaled"

    # --- batch mode: whole tensor is either zero or uniformly scaled ---
    module_b = StochasticDepth(p=0.3, mode="batch")
    yb = jax.block_until_ready(module_b(x, key=kbatch))
    srb = 1.0 - module_b.p
    ok_zero = bool(jnp.all(yb == 0.0))
    ok_scaled = bool(jnp.allclose(yb, x / srb, rtol=1e-6, atol=1e-6))
    assert ok_zero or ok_scaled, "batch-mode output neither dropped nor scaled"

    # --- eval mode / p == 0 must be identity ---
    module.training = False
    y_eval = jax.block_until_ready(module(x))
    assert bool(jnp.array_equal(y_eval, x))

    print("KERNEL_OK")
</pallas_src>

<mosaic_0001>
module attributes {stable_mosaic.version = 11 : i64} {
  func.func @_sd_row3d_kernel(%arg0: i32, %arg1: i32, %arg2: memref<2xf32, #tpu.memory_space<smem>>, %arg3: memref<1x8x128xf32, #tpu.memory_space<vmem>>, %arg4: memref<1x8x128xf32, #tpu.memory_space<vmem>>) attributes {dimension_semantics = [#tpu.dimension_semantics<parallel>, #tpu.dimension_semantics<parallel>], iteration_bounds = array<i64: 2, 1>, scalar_prefetch = 0 : i64, scratch_operands = 0 : i64, tpu.core_type = #tpu.core_type<tc>, window_params = [{transform_indices = @transform_0, window_bounds = array<i64: 2>}, {transform_indices = @transform_1, window_bounds = array<i64: 1, 8, 128>}, {transform_indices = @transform_2, window_bounds = array<i64: 1, 8, 128>}]} {
    %0 = arith.index_cast %arg0 : i32 to index
    %1 = memref.load %arg2[%0] : memref<2xf32, #tpu.memory_space<smem>>
    %c0 = arith.constant 0 : index
    %c0_0 = arith.constant 0 : index
    %c0_1 = arith.constant 0 : index
    %2 = vector.load %arg3[%c0, %c0_0, %c0_1] : memref<1x8x128xf32, #tpu.memory_space<vmem>>, vector<1x8x128xf32>
    %3 = vector.broadcast %1 : f32 to vector<1x8x128xf32>
    %4 = arith.mulf %2, %3 : vector<1x8x128xf32>
    %c0_2 = arith.constant 0 : index
    %c0_3 = arith.constant 0 : index
    %c0_4 = arith.constant 0 : index
    %5 = vector.load %arg4[%c0_2, %c0_3, %c0_4] : memref<1x8x128xf32, #tpu.memory_space<vmem>>, vector<1x8x128xf32>
    tpu.vector_store %arg4[%c0_2, %c0_3, %c0_4], %4 {strides = array<i32>} : memref<1x8x128xf32, #tpu.memory_space<vmem>>, vector<1x8x128xf32>,
    return
  }
  func.func @transform_0(%arg0: i32, %arg1: i32) -> i32 {
    %c0_i32 = arith.constant 0 : i32
    %c0_i32_0 = arith.constant 0 : i32
    return %c0_i32 : i32
  }
  func.func @transform_1(%arg0: i32, %arg1: i32) -> (i32, i32, i32) {
    %c0_i32 = arith.constant 0 : i32
    %c0_i32_0 = arith.constant 0 : i32
    return %arg0, %arg1, %c0_i32 : i32, i32, i32
  }
  func.func @transform_2(%arg0: i32, %arg1: i32) -> (i32, i32, i32) {
    %c0_i32 = arith.constant 0 : i32
    %c0_i32_0 = arith.constant 0 : i32
    return %arg0, %arg1, %c0_i32 : i32, i32, i32
  }
}

</mosaic_0001>

<llo_original>
// kernel: tpu_custom_call.1
$region0: #{tpu_custom_call.1}
  #allocation0 [shape = 'u32[]', space=smem, size = 0x4, offset = 0x4, fixed_abs, tag = 'smem constant byte address 0x4 - core index']
  #allocation1 [shape = 'u32[144,128]{1,0:T(1,128)}', space=vmem, size = 0x12000, scoped, tag = 'internal scratch']
  %s0 = inlined_call_operand.hbm [shape: f32[2], index: 0, kind: input, shape index: {}]
  %s1 = inlined_call_operand.hbm [shape: f32[2,8,128], index: 1, kind: input, shape index: {}]
  %s2 = inlined_call_operand.hbm [shape: f32[2,8,128], index: 2, kind: output, shape index: {}]
  %s3 = sld [smem:[#allocation0]]
  $region49: #{tpu_custom_call.1} parent=0
    _
  %s5 = ssub.s32 1, %s3
  %s6 = scalar_select 0, %s5, %s3
  $region1: #{tpu_custom_call.1} parent=0
    #allocation2 [shape = 'u8[512]{0}', space=smem, size = 0x200, scoped, tag = 'input window, operand 0, single buffered']
    #allocation3 [shape = 's32[2]{0}', space=sflag, size = 0x8, scoped, tag = 'scoped memory for tpu_custom_call.1']
    #allocation4 [shape = 's32[2]{0}', space=sflag, size = 0x8, scoped, tag = 'scoped memory for tpu_custom_call.1']
    #allocation5 [shape = 's32[2]{0}', space=sflag, size = 0x8, scoped, tag = 'scoped memory for tpu_custom_call.1']
    #allocation6 [shape = 'u8[8192]{0}', space=vmem, size = 0x2000, scoped, tag = 'input window, operand 1']
    #allocation7 [shape = 'u8[8192]{0}', space=vmem, size = 0x2000, scoped, tag = 'output window, operand 0']
    %7 = vsyncpa [#allocation5], 0
    %8 = vsyncpa [#allocation3], 0
    %s9 = scalar_lea.sflag [#allocation3], 1
    %10 = vsyncpa %s9, 0
    %11 = vsyncpa [#allocation4], 0
    %s12 = scalar_lea.sflag [#allocation4], 1
    %13 = vsyncpa %s12, 0
    loop: start=0, step=1, limit=4
    $region2: #{tpu_custom_call.1} parent=1 // loop_pre_header
      _
    $region3: #{tpu_custom_call.1} parent=1 // loop_header
      %s15 = sphi 0, %s19
      %p16 = scmp.ge.s32.totalorder %s15, 4
      %s22 = sphi 0, %s34
      %s23 = sphi 0, %s30
      %s24 = sphi 0, %s22
      %s25 = sphi 0, %s23
      %s26 = sphi 0, %s24
      %s27 = sphi 0, %s25
      %s35 = sphi 0, %s35
      %s37 = sphi 0, %s35
      %s38 = sphi 0, %s37
      %s52 = sphi 0, %s38
      %s60 = sphi 0, %s62
      %s63 = sphi 0, %s60
      %s64 = sphi 0, %s63
      %s80 = sphi 0, %s64
      %s88 = sphi 0, %s90
      %s91 = sphi 0, %s88
      %s92 = sphi 0, %s91
      %s108 = sphi 0, %s92
    $region4: #{tpu_custom_call.1} parent=1 // loop_header_branch
      %18 = sbr.rel (%p16) target = $region8
    $region5: #{tpu_custom_call.1} parent=1 // loop_body
      %s20 = ssub.s32 %s15, 1
      %s21 = ssub.s32 %s15, 2
      %s28 = sadd.s32 1, %s23
      %p29 = scmp.ge.s32.totalorder %s28, 1
      %s30 = scalar_select %p29, 0, %s28
      %s31 = sadd.s32 1, %s22
      %s32 = scalar_select %p29, %s31, %s22
      %p33 = scmp.ge.s32.totalorder %s32, 2
      %s34 = scalar_select %p33, 0, %s32
      %s36 = sadd.s32 %s35, 1
      %p39 = scmp.eq.s32.totalorder %s15, 1
      %p40 = scmp.ne.s32.totalorder %s35, %s37
      %p41 = scmp.eq.s32.totalorder %s15, 0
      %p42 = por %p40, %p41
      %p43 = scmp.ne.s32.totalorder %s35, %s37
      %p44 = scmp.eq.s32.totalorder %s20, 1
      %p45 = por %p43, %p44
      %p46 = scmp.ne.s32.totalorder %s37, %s38
      %p47 = scmp.eq.s32.totalorder %s20, 0
      %p48 = por %p46, %p47
      %p49 = scmp.ne.s32.totalorder %s37, %s38
      %p50 = scmp.eq.s32.totalorder %s21, 1
      %p51 = por %p49, %p50
      %p53 = scmp.ne.s32.totalorder %s38, %s52
      %p54 = scmp.eq.s32.totalorder %s21, 0
      %p55 = por %p53, %p54
      %s56 = ssub.s32 %s22, %s34
      %s57 = ssub.s32 %s23, %s30
      %s58 = sor.u32 %s56, %s57
      %p59 = scmp.eq.s32.totalorder %s58, 0
      %s61 = sadd.s32 %s60, 1
      %s62 = scalar_select %p59, %s60, %s61
      %p65 = pneg %p59
      %p66 = scmp.eq.s32.totalorder %s15, 1
      %p67 = por %p65, %p66
      %p68 = scmp.ne.s32.totalorder %s60, %s63
      %p69 = scmp.eq.s32.totalorder %s15, 0
      %p70 = por %p68, %p69
      %p71 = scmp.ne.s32.totalorder %s60, %s63
      %p72 = scmp.eq.s32.totalorder %s20, 1
      %p73 = por %p71, %p72
      %p74 = scmp.ne.s32.totalorder %s63, %s64
      %p75 = scmp.eq.s32.totalorder %s20, 0
      %p76 = por %p74, %p75
      %p77 = scmp.ne.s32.totalorder %s63, %s64
      %p78 = scmp.eq.s32.totalorder %s21, 1
      %p79 = por %p77, %p78
      %p81 = scmp.ne.s32.totalorder %s64, %s80
      %p82 = scmp.eq.s32.totalorder %s21, 0
      %p83 = por %p81, %p82
      %s84 = ssub.s32 %s22, %s34
      %s85 = ssub.s32 %s23, %s30
      %s86 = sor.u32 %s84, %s85
      %p87 = scmp.eq.s32.totalorder %s86, 0
      %s89 = sadd.s32 %s88, 1
      %s90 = scalar_select %p87, %s88, %s89
      %p93 = pneg %p87
      %p94 = scmp.eq.s32.totalorder %s15, 1
      %p95 = por %p93, %p94
      %p96 = scmp.ne.s32.totalorder %s88, %s91
      %p97 = scmp.eq.s32.totalorder %s15, 0
      %p98 = por %p96, %p97
      %p99 = scmp.ne.s32.totalorder %s88, %s91
      %p100 = scmp.eq.s32.totalorder %s20, 1
      %p101 = por %p99, %p100
      %p102 = scmp.ne.s32.totalorder %s91, %s92
      %p103 = scmp.eq.s32.totalorder %s20, 0
      %p104 = por %p102, %p103
      %p105 = scmp.ne.s32.totalorder %s91, %s92
      %p106 = scmp.eq.s32.totalorder %s21, 1
      %p107 = por %p105, %p106
      %p109 = scmp.ne.s32.totalorder %s92, %s108
      %p110 = scmp.eq.s32.totalorder %s21, 0
      %p111 = por %p109, %p110
      %p112 = scmp.le.s32.totalorder 1, %s15
      %p113 = scmp.lt.s32.totalorder %s15, 3
      %p114 = pnand %p112, %p113
      %p115 = pneg %p114
      // Predicated region
      $region9: #{tpu_custom_call.1} parent=5 // pred_check
        _
      $region10: #{tpu_custom_call.1} parent=5 // pred_check_branch
        %117 = sbr.rel (%p114) target = $region12
      $region11: #{tpu_custom_call.1} parent=5 // pred_region
        %s118 = ssub.s32 %s15, 1
        // Predicated region
        $region13: #{tpu_custom_call.1} parent=11 // pred_check
          %p119 = pneg %p48
        $region14: #{tpu_custom_call.1} parent=11 // pred_check_branch
          %121 = sbr.rel (%p119) target = $region16
        $region15: #{tpu_custom_call.1} parent=11 // pred_region
          %s123 = ssub.s32 16, 16
          %124 = vsyncadd [#allocation5], %s123
          %127 = dma.hbm_to_smem %s0, 16, [#allocation2], [#allocation5]
        $region16: #{tpu_custom_call.1} parent=11 // pred_fallthru
          _
      $region12: #{tpu_custom_call.1} parent=5 // pred_fallthru
        _
      %p128 = scmp.lt.s32.totalorder %s15, 2
      // Predicated region
      $region17: #{tpu_custom_call.1} parent=5 // pred_check
        %p129 = pneg %p128
      $region18: #{tpu_custom_call.1} parent=5 // pred_check_branch
        %131 = sbr.rel (%p129) target = $region20
      $region19: #{tpu_custom_call.1} parent=5 // pred_region
        // Predicated region
        $region21: #{tpu_custom_call.1} parent=19 // pred_check
          %p132 = pneg %p70
        $region22: #{tpu_custom_call.1} parent=19 // pred_check_branch
          %134 = sbr.rel (%p132) target = $region24
        $region23: #{tpu_custom_call.1} parent=19 // pred_region
          %s135 = sand.u32 %s60, 1
          %s136 = scalar_lea.sflag [#allocation3], %s135
          %s137 = sand.u32 %s60, 1
          %s138 = smul.addr %s137, 8
          %s139 = scalar_lea.vmem [#allocation6], %s138
          %s141 = ssub.s32 128, 128
          %142 = vsyncadd %s136, %s141
          %s143 = sadd.s32 %s23, %s22
          %s144 = smul.addr %s143, 128
          %s145 = scalar_lea.hbm %s1, %s144
          %s147 = sshll.u32 %s139, 4
          %s148 = int_to_ptr.vmem [resolvable:$true] %s147
          %150 = dma.hbm_to_vmem [thread:$0]  %s145, 128, %s148, %s136
        $region24: #{tpu_custom_call.1} parent=19 // pred_fallthru
          _
      $region20: #{tpu_custom_call.1} parent=5 // pred_fallthru
        _
      %p151 = scmp.le.s32.totalorder 1, %s15
      %p152 = scmp.lt.s32.totalorder %s15, 3
      %p153 = pnand %p151, %p152
      %p154 = pneg %p153
      // Predicated region
      $region25: #{tpu_custom_call.1} parent=5 // pred_check
        _
      $region26: #{tpu_custom_call.1} parent=5 // pred_check_branch
        %156 = sbr.rel (%p153) target = $region28
      $region27: #{tpu_custom_call.1} parent=5 // pred_region
        %s157 = ssub.s32 %s15, 1
        // Predicated region
        $region29: #{tpu_custom_call.1} parent=27 // pred_check
          %p158 = pneg %p48
        $region30: #{tpu_custom_call.1} parent=27 // pred_check_branch
          %160 = sbr.rel (%p158) target = $region32
        $region31: #{tpu_custom_call.1} parent=27 // pred_region
          %161 = dma.done [#allocation5], 16
        $region32: #{tpu_custom_call.1} parent=27 // pred_fallthru
          _
        %s162 = sand.u32 %s63, 1
        %s163 = scalar_lea.sflag [#allocation3], %s162
        %s164 = sand.u32 %s63, 1
        %s165 = smul.addr %s164, 8
        %s166 = scalar_lea.vmem [#allocation6], %s165
        // Predicated region
        $region33: #{tpu_custom_call.1} parent=27 // pred_check
          %p167 = pneg %p76
        $region34: #{tpu_custom_call.1} parent=27 // pred_check_branch
          %169 = sbr.rel (%p167) target = $region36
        $region35: #{tpu_custom_call.1} parent=27 // pred_region
          %170 = dma.done %s163, 128
        $region36: #{tpu_custom_call.1} parent=27 // pred_fallthru
          _
        %171 = sfence
        %p172 = pneg %p48
        %p173 = pneg %p45
        %s174 = sand.u32 %s63, 1
        %s175 = scalar_lea.sflag [#allocation3], %s174
        %s176 = sand.u32 %s63, 1
        %s177 = smul.addr %s176, 8
        %s178 = scalar_lea.vmem [#allocation6], %s177
        %p179 = pneg %p76
        %p180 = pneg %p73
        %p181 = pneg %p104
        %p182 = pneg %p101
        %s183 = sand.u32 %s91, 1
        %s184 = scalar_lea.sflag [#allocation4], %s183
        %s185 = sand.u32 %s91, 1
        %s186 = smul.addr %s185, 8
        %s187 = scalar_lea.vmem [#allocation7], %s186
        %s188 = sld [smem:[#allocation2 + %s24]]
        %v189 = vld [vmem:[%s166] sm:$0xff]
        %v190 = vstv %s188
        %v191 = vmul.f32 %v189, %v190
        %192 = vst [vmem:[%s187] sm:$0xff] %v191
        %s193 = sand.u32 %s91, 1
        %s194 = scalar_lea.sflag [#allocation4], %s193
        %s195 = sand.u32 %s91, 1
        %s196 = smul.addr %s195, 8
        %s197 = scalar_lea.vmem [#allocation7], %s196
        // Predicated region
        $region37: #{tpu_custom_call.1} parent=27 // pred_check
          %p198 = pneg %p101
        $region38: #{tpu_custom_call.1} parent=27 // pred_check_branch
          %200 = sbr.rel (%p198) target = $region40
        $region39: #{tpu_custom_call.1} parent=27 // pred_region
          %s202 = ssub.s32 128, 128
          %203 = vsyncadd %s194, %s202
          %s204 = sadd.s32 %s25, %s24
          %s205 = smul.addr %s204, 128
          %s206 = scalar_lea.hbm %s2, %s205
          %s208 = sshll.u32 %s197, 4
          %s209 = int_to_ptr.vmem [resolvable:$true] %s208
          %211 = dma.vmem_to_hbm [thread:$0]  %s209, 128, %s206, %s194
        $region40: #{tpu_custom_call.1} parent=27 // pred_fallthru
          _
      $region28: #{tpu_custom_call.1} parent=5 // pred_fallthru
        _
      %p212 = scmp.le.s32.totalorder 2, %s15
      // Predicated region
      $region41: #{tpu_custom_call.1} parent=5 // pred_check
        %p213 = pneg %p212
      $region42: #{tpu_custom_call.1} parent=5 // pred_check_branch
        %215 = sbr.rel (%p213) target = $region44
      $region43: #{tpu_custom_call.1} parent=5 // pred_region
        %s216 = ssub.s32 %s15, 2
        // Predicated region
        $region45: #{tpu_custom_call.1} parent=43 // pred_check
          %p217 = pneg %p107
        $region46: #{tpu_custom_call.1} parent=43 // pred_check_branch
          %219 = sbr.rel (%p217) target = $region48
        $region47: #{tpu_custom_call.1} parent=43 // pred_region
          %s220 = sand.u32 %s92, 1
          %s221 = scalar_lea.sflag [#allocation4], %s220
          %s222 = sand.u32 %s92, 1
          %s223 = smul.addr %s222, 8
          %s224 = scalar_lea.vmem [#allocation7], %s223
          %225 = dma.done %s221, 128
        $region48: #{tpu_custom_call.1} parent=43 // pred_fallthru
          _
      $region44: #{tpu_custom_call.1} parent=5 // pred_fallthru
        _
    $region6: #{tpu_custom_call.1} parent=1 // loop_footer
      %s19 = sadd.s32 1, %s15
    $region7: #{tpu_custom_call.1} parent=1 // loop_footer_branch
      %14 = sbr.rel target = $region3
    $region8: #{tpu_custom_call.1} parent=1 // loop_exit
      _
    %226 = vsyncpa [#allocation3], 1
    %s227 = scalar_lea.sflag [#allocation3], 1
    %228 = vsyncpa %s227, 1
    %229 = vsyncpa [#allocation4], 1
    %s230 = scalar_lea.sflag [#allocation4], 1
    %231 = vsyncpa %s230, 1
    %232 = vsyncpa [#allocation5], 1
    %s233 = scalar_lea.sflag [#allocation5], 1
    %234 = vsyncpa %s233, 1

</llo_original>
